<compile_context>
chip_gen: v5e
topology: v5e:2x2
jax: 0.10.0
libtpu: 0.0.40
codegen_flags: <defaults>
</compile_context>

<pallas_src>
import functools

import jax
import jax.numpy as jnp
from jax.experimental import pallas as pl
from jax.experimental.pallas import tpu as pltpu

_LANES = 128
_SUBLANES = 8
_QUAT = 4  # 4 divides 128 -> 32 quaternions per 128-lane row


def _quat_loss_kernel(q1_ref, q2_ref, out_ref, acc_ref, *,
                      tile_rows, tiles_per_split, valid_rows, emit_row_mask):
    i = pl.program_id(0)   # split axis ("parallel": sharded across TCs on megacore parts)
    j = pl.program_id(1)   # reduction axis ("arbitrary", innermost)

    @pl.when(j == 0)
    def _init():
        acc_ref[...] = jnp.zeros_like(acc_ref)

    a = q1_ref[...].astype(jnp.float32)
    b = q2_ref[...].astype(jnp.float32)
    p = a * b                                          # VPU elementwise

    # Per-quaternion dot via two XLU lane rolls: lanes with l % 4 == 3 hold the
    # full 4-element dot product (4 | 128, so groups never cross the lane wrap).
    s = p + pltpu.roll(p, shift=1, axis=1)
    s = s + pltpu.roll(s, shift=2, axis=1)

    # One-vreg lane mask built once per step ((lane & 3) == 3), applied as a
    # single broadcast multiply -- replaces the old per-vreg iota/mod/select.
    lane = jax.lax.broadcasted_iota(jnp.int32, (1, _LANES), 1)
    mask = ((lane & 3) == (_QUAT - 1)).astype(jnp.float32)
    dot_sq = (s * s) * mask                            # (tile_rows, 128)

    def _reduce(x):
        # (tile_rows,128) -> (tile_rows//8, 8, 128) is a free vreg regrouping;
        # summing axis 0 is plain vreg-wise VPU adds into one (8,128) slab.
        return x.reshape(tile_rows // _SUBLANES, _SUBLANES, _LANES).sum(axis=0)

    if not emit_row_mask:
        # Grid coverage exactly matches the array: every tile is full.
        acc_ref[...] += _reduce(dot_sq)
    else:
        row0 = (i * tiles_per_split + j) * tile_rows   # scalar-unit arithmetic

        @pl.when(row0 + tile_rows <= valid_rows)       # hot path: full tile
        def _full():
            acc_ref[...] += _reduce(dot_sq)

        @pl.when(row0 + tile_rows > valid_rows)        # cold path: ragged / overlap tile
        def _ragged():
            grow = row0 + jax.lax.broadcasted_iota(
                jnp.int32, (tile_rows, _LANES), 0)
            # where-select (not multiply) so garbage rows (possibly inf/NaN)
            # never contaminate the sum.
            acc_ref[...] += _reduce(jnp.where(grow < valid_rows, dot_sq, 0.0))

    @pl.when(j == pl.num_programs(1) - 1)
    def _finalize():
        out_ref[...] = acc_ref[...]                    # lane-dense (8,128) slab


def _detect_num_tensorcores() -> int:
    """Best-effort TensorCore count; falls back to 1 (single-core behaviour)."""
    try:
        info = pltpu.get_tpu_info()
    except Exception:
        return 1
    for name in ("num_cores", "core_count", "num_tensorcores", "tensor_core_count"):
        v = getattr(info, name, None)
        if v:
            return int(v)
    return 1


def quaternion_loss(q1: jax.Array, q2: jax.Array, *, tile_rows: int | None = None) -> jax.Array:
    """Pallas TPU implementation of QuaternionLoss.forward.

    Args:
      q1, q2: (N, 4) quaternions (f32 or bf16).
      tile_rows: rows (of 128 lanes = 32 quaternions each) per grid step.
        Default is sized for ~1 MiB per input block.
    Returns:
      scalar float32 loss.
    """
    assert q1.shape == q2.shape and q1.ndim == 2 and q1.shape[1] == _QUAT
    n = q1.shape[0]
    assert n > 0, "QuaternionLoss of an empty batch is undefined"
    total = n * _QUAT

    # Lane-dense view: (N,4) -> (rows,128) is a free bitcast when N % 32 == 0.
    rows = pl.cdiv(total, _LANES)
    if rows * _LANES != total:
        # Minimal zero pad (< 1 sublane-tile of extra zeros) -- the only case
        # that requires a copy; padded quaternions contribute 0 to the sum.
        rows = pl.cdiv(rows, _SUBLANES) * _SUBLANES
    padded_total = rows * _LANES

    def _prep(q):
        if padded_total == total:
            return q.reshape(rows, _LANES)             # free bitcast, zero-copy
        flat = q.reshape(-1)
        flat = jnp.pad(flat, (0, padded_total - total))
        return flat.reshape(rows, _LANES)

    a, b = _prep(q1), _prep(q2)

    # ~1 MiB per input block (2048 rows f32 / 4096 rows bf16); double-buffered
    # 2 inputs -> ~4 MiB VMEM, well inside every generation's budget.
    if tile_rows is None:
        itemsize = jnp.dtype(q1.dtype).itemsize
        tile_rows = ((1 << 20) // (_LANES * itemsize)) // _SUBLANES * _SUBLANES
    tile_rows = max(_SUBLANES, (tile_rows // _SUBLANES) * _SUBLANES)
    tile_rows = min(tile_rows, pl.cdiv(rows, _SUBLANES) * _SUBLANES)

    num_tiles = pl.cdiv(rows, tile_rows)
    # 2-way split only on multi-TensorCore (megacore / v7x) parts with enough work.
    # TODO(synk): switch the split axis to pltpu.CORE_PARALLEL once verified on v7x.
    n_splits = 2 if (_detect_num_tensorcores() >= 2 and num_tiles >= 2) else 1
    tiles_per_split = pl.cdiv(num_tiles, n_splits)
    emit_row_mask = (n_splits * tiles_per_split * tile_rows) != rows

    # Clamp the block index so boundary / overlap DMAs stay in-bounds; the
    # kernel zero-masks by *global* (unclamped) row index, so duplicated tiles
    # contribute exactly 0.
    def in_index(i, j):
        t = i * tiles_per_split + j
        return (jnp.minimum(t, num_tiles - 1), 0)

    in_spec = pl.BlockSpec((tile_rows, _LANES), in_index)

    kernel = functools.partial(
        _quat_loss_kernel,
        tile_rows=tile_rows,
        tiles_per_split=tiles_per_split,
        valid_rows=rows,
        emit_row_mask=emit_row_mask,
    )

    partials = pl.pallas_call(
        kernel,
        out_shape=jax.ShapeDtypeStruct((n_splits, _SUBLANES, _LANES), jnp.float32),
        grid_spec=pltpu.PrefetchScalarGridSpec(
            num_scalar_prefetch=0,
            grid=(n_splits, tiles_per_split),
            in_specs=[in_spec, in_spec],
            out_specs=pl.BlockSpec((None, _SUBLANES, _LANES), lambda i, j: (i, 0, 0)),
            scratch_shapes=[pltpu.VMEM((_SUBLANES, _LANES), jnp.float32)],
        ),
        compiler_params=pltpu.CompilerParams(
            dimension_semantics=("parallel", "arbitrary"),
            vmem_limit_bytes=32 * 1024 * 1024,
        ),
    )(a, b)

    # mean(1 - dot^2) = 1 - sum(dot^2) / N  (padded / masked elements add 0).
    return 1.0 - jnp.sum(partials) / n


def _reference(q1, q2):
    dots = jnp.sum(q1.astype(jnp.float32) * q2.astype(jnp.float32), axis=1)
    return jnp.mean(1.0 - dots ** 2)


if __name__ == "__main__":
    key = jax.random.PRNGKey(0)
    k1, k2, k3, k4 = jax.random.split(key, 4)

    # Small (N, 4) quaternion batch matching the module's contract
    # (exercises the minimal-pad path: N % 32 != 0).
    N = 8
    q1 = jax.random.normal(k1, (N, 4), dtype=jnp.float32)
    q2 = jax.random.normal(k2, (N, 4), dtype=jnp.float32)
    q1 = q1 / jnp.linalg.norm(q1, axis=1, keepdims=True)
    q2 = q2 / jnp.linalg.norm(q2, axis=1, keepdims=True)

    loss = jax.block_until_ready(quaternion_loss(q1, q2))
    ref = _reference(q1, q2)
    assert jnp.allclose(loss, ref, atol=1e-5, rtol=1e-5), (loss, ref)

    # Aligned (zero-copy bitcast) multi-tile accumulation path.
    N2 = 1024
    q1b = jax.random.normal(k3, (N2, 4), dtype=jnp.float32)
    q2b = jax.random.normal(k4, (N2, 4), dtype=jnp.float32)
    q1b = q1b / jnp.linalg.norm(q1b, axis=1, keepdims=True)
    q2b = q2b / jnp.linalg.norm(q2b, axis=1, keepdims=True)

    loss2 = jax.block_until_ready(quaternion_loss(q1b, q2b, tile_rows=8))
    ref2 = _reference(q1b, q2b)
    assert jnp.allclose(loss2, ref2, atol=1e-5, rtol=1e-5), (loss2, ref2)

    print("KERNEL_OK")
</pallas_src>

<mosaic_0001>
module attributes {stable_mosaic.version = 11 : i64} {
  func.func @_quat_loss_kernel(%arg0: i32, %arg1: i32, %arg2: memref<8x128xf32, #tpu.memory_space<vmem>>, %arg3: memref<8x128xf32, #tpu.memory_space<vmem>>, %arg4: memref<1x8x128xf32, #tpu.memory_space<vmem>>, %arg5: memref<8x128xf32, #tpu.memory_space<vmem>>) attributes {dimension_semantics = [#tpu.dimension_semantics<parallel>, #tpu.dimension_semantics<arbitrary>], iteration_bounds = array<i64: 1, 1>, scalar_prefetch = 0 : i64, scratch_operands = 1 : i64, tpu.core_type = #tpu.core_type<tc>, window_params = [{transform_indices = @transform_0, window_bounds = array<i64: 8, 128>}, {transform_indices = @transform_1, window_bounds = array<i64: 8, 128>}, {transform_indices = @transform_2, window_bounds = array<i64: 1, 8, 128>}]} {
    %c0_i32 = arith.constant 0 : i32
    %0 = arith.cmpi eq, %arg1, %c0_i32 : i32
    %1 = arith.extui %0 : i1 to i32
    %c0_i32_0 = arith.constant 0 : i32
    %2 = arith.cmpi ne, %1, %c0_i32_0 : i32
    scf.if %2 {
      %cst_11 = arith.constant 0.000000e+00 : f32
      %28 = vector.broadcast %cst_11 : f32 to vector<8x128xf32>
      %c0_12 = arith.constant 0 : index
      %c0_13 = arith.constant 0 : index
      %29 = vector.load %arg5[%c0_12, %c0_13] : memref<8x128xf32, #tpu.memory_space<vmem>>, vector<8x128xf32>
      tpu.vector_store %arg5[%c0_12, %c0_13], %28 {strides = array<i32>} : memref<8x128xf32, #tpu.memory_space<vmem>>, vector<8x128xf32>,
    } else {
    }
    %c0 = arith.constant 0 : index
    %c0_1 = arith.constant 0 : index
    %3 = vector.load %arg2[%c0, %c0_1] : memref<8x128xf32, #tpu.memory_space<vmem>>, vector<8x128xf32>
    %c0_2 = arith.constant 0 : index
    %c0_3 = arith.constant 0 : index
    %4 = vector.load %arg3[%c0_2, %c0_3] : memref<8x128xf32, #tpu.memory_space<vmem>>, vector<8x128xf32>
    %5 = arith.mulf %3, %4 : vector<8x128xf32>
    %c1_i32 = arith.constant 1 : i32
    %6 = tpu.dynamic_rotate %5 by %c1_i32 dim 1 : vector<8x128xf32>, i32 -> vector<8x128xf32>
    %7 = arith.addf %5, %6 : vector<8x128xf32>
    %c2_i32 = arith.constant 2 : i32
    %8 = tpu.dynamic_rotate %7 by %c2_i32 dim 1 : vector<8x128xf32>, i32 -> vector<8x128xf32>
    %9 = arith.addf %7, %8 : vector<8x128xf32>
    %10 = tpu.iota {dimensions = array<i32: 1>} : vector<1x128xi32>
    %c3_i32 = arith.constant 3 : i32
    %11 = vector.broadcast %c3_i32 : i32 to vector<1x128xi32>
    %12 = arith.andi %10, %11 : vector<1x128xi32>
    %c3_i32_4 = arith.constant 3 : i32
    %13 = vector.broadcast %c3_i32_4 : i32 to vector<1x128xi32>
    %14 = arith.cmpi eq, %12, %13 : vector<1x128xi32>
    %15 = arith.extui %14 : vector<1x128xi1> to vector<1x128xi32>
    %16 = arith.sitofp %15 : vector<1x128xi32> to vector<1x128xf32>
    %17 = arith.mulf %9, %9 : vector<8x128xf32>
    %18 = vector.broadcast %16 : vector<1x128xf32> to vector<8x128xf32>
    %19 = arith.mulf %17, %18 : vector<8x128xf32>
    %c0_5 = arith.constant 0 : index
    %c0_6 = arith.constant 0 : index
    %20 = vector.load %arg5[%c0_5, %c0_6] : memref<8x128xf32, #tpu.memory_space<vmem>>, vector<8x128xf32>
    %21 = vector.shape_cast %19 : vector<8x128xf32> to vector<1x8x128xf32>
    %cst = arith.constant dense<0.000000e+00> : vector<8x128xf32>
    %22 = vector.multi_reduction <add>, %21, %cst [0] : vector<1x8x128xf32> to vector<8x128xf32>
    %23 = arith.addf %20, %22 : vector<8x128xf32>
    %c0_7 = arith.constant 0 : index
    %c0_8 = arith.constant 0 : index
    %24 = vector.load %arg5[%c0_7, %c0_8] : memref<8x128xf32, #tpu.memory_space<vmem>>, vector<8x128xf32>
    tpu.vector_store %arg5[%c0_7, %c0_8], %23 {strides = array<i32>} : memref<8x128xf32, #tpu.memory_space<vmem>>, vector<8x128xf32>,
    %c0_i32_9 = arith.constant 0 : i32
    %25 = arith.cmpi eq, %arg1, %c0_i32_9 : i32
    %26 = arith.extui %25 : i1 to i32
    %c0_i32_10 = arith.constant 0 : i32
    %27 = arith.cmpi ne, %26, %c0_i32_10 : i32
    scf.if %27 {
      %c0_11 = arith.constant 0 : index
      %c0_12 = arith.constant 0 : index
      %28 = vector.load %arg5[%c0_11, %c0_12] : memref<8x128xf32, #tpu.memory_space<vmem>>, vector<8x128xf32>
      %c0_13 = arith.constant 0 : index
      %c0_14 = arith.constant 0 : index
      %c0_15 = arith.constant 0 : index
      %29 = vector.load %arg4[%c0_13, %c0_14, %c0_15] : memref<1x8x128xf32, #tpu.memory_space<vmem>>, vector<1x8x128xf32>
      %30 = vector.shape_cast %29 : vector<1x8x128xf32> to vector<8x128xf32>
      %31 = vector.shape_cast %28 : vector<8x128xf32> to vector<1x8x128xf32>
      tpu.vector_store %arg4[%c0_13, %c0_14, %c0_15], %31 {strides = array<i32>} : memref<1x8x128xf32, #tpu.memory_space<vmem>>, vector<1x8x128xf32>,
    } else {
    }
    return
  }
  func.func @transform_0(%arg0: i32, %arg1: i32) -> (i32, i32) {
    %c1_i32 = arith.constant 1 : i32
    %0 = arith.muli %arg0, %c1_i32 : i32
    %1 = arith.addi %0, %arg1 : i32
    %c0_i32 = arith.constant 0 : i32
    %2 = arith.minsi %1, %c0_i32 : i32
    %c0_i32_0 = arith.constant 0 : i32
    %c0_i32_1 = arith.constant 0 : i32
    return %2, %c0_i32_0 : i32, i32
  }
  func.func @transform_1(%arg0: i32, %arg1: i32) -> (i32, i32) {
    %c1_i32 = arith.constant 1 : i32
    %0 = arith.muli %arg0, %c1_i32 : i32
    %1 = arith.addi %0, %arg1 : i32
    %c0_i32 = arith.constant 0 : i32
    %2 = arith.minsi %1, %c0_i32 : i32
    %c0_i32_0 = arith.constant 0 : i32
    %c0_i32_1 = arith.constant 0 : i32
    return %2, %c0_i32_0 : i32, i32
  }
  func.func @transform_2(%arg0: i32, %arg1: i32) -> (i32, i32, i32) {
    %c0_i32 = arith.constant 0 : i32
    %c0_i32_0 = arith.constant 0 : i32
    %c0_i32_1 = arith.constant 0 : i32
    return %arg0, %c0_i32, %c0_i32_0 : i32, i32, i32
  }
}

</mosaic_0001>

<llo_original>
// kernel: tpu_custom_call.1
$region0: #{tpu_custom_call.1}
  #allocation0 [shape = 'u32[]', space=smem, size = 0x4, offset = 0x4, fixed_abs, tag = 'smem constant byte address 0x4 - core index']
  #allocation1 [shape = 'u32[72,128]{1,0:T(1,128)}', space=vmem, size = 0x9000, scoped, tag = 'internal scratch']
  #allocation2 [shape = 'f32[8,128]{1,0:T(8,128)}', space=vmem, size = 0x1000, scoped, tag = 'scratch operand']
  %s0 = inlined_call_operand.hbm [shape: f32[8,128], index: 0, kind: input, shape index: {}]
  %s1 = inlined_call_operand.hbm [shape: f32[8,128], index: 1, kind: input, shape index: {}]
  %s2 = inlined_call_operand.hbm [shape: f32[1,8,128], index: 2, kind: output, shape index: {}]
  %s3 = sld [smem:[#allocation0]]
  $region34: #{tpu_custom_call.1} parent=0
    _
  %s5 = ssub.s32 1, %s3
  %s6 = scalar_select 0, %s5, %s3
  $region1: #{tpu_custom_call.1} parent=0
    #allocation3 [shape = 'u8[4096]{0}', space=vmem, size = 0x1000, scoped, tag = 'input window, operand 0, single buffered']
    #allocation4 [shape = 's32[1]{0}', space=sflag, size = 0x4, scoped, tag = 'scoped memory for tpu_custom_call.1']
    #allocation5 [shape = 's32[1]{0}', space=sflag, size = 0x4, scoped, tag = 'scoped memory for tpu_custom_call.1']
    #allocation6 [shape = 'u8[4096]{0}', space=vmem, size = 0x1000, scoped, tag = 'input window, operand 1, single buffered']
    #allocation7 [shape = 's32[1]{0}', space=sflag, size = 0x4, scoped, tag = 'scoped memory for tpu_custom_call.1']
    #allocation8 [shape = 'u8[4096]{0}', space=vmem, size = 0x1000, scoped, tag = 'output window, operand 0, single buffered']
    %7 = vsyncpa [#allocation4], 0
    %8 = vsyncpa [#allocation7], 0
    %9 = vsyncpa [#allocation5], 0
    // Predicated region
    $region2: #{tpu_custom_call.1} parent=1 // pred_check
      _
    $region3: #{tpu_custom_call.1} parent=1 // pred_check_branch
      %11 = sbr.rel (0) target = $region5
    $region4: #{tpu_custom_call.1} parent=1 // pred_region
      %s12 = sadd.s32 0, 0
      %p13 = scmp.lt.s32.totalorder %s12, 0
      %s14 = scalar_select %p13, %s12, 0
      %16 = vsyncadd [#allocation4], 0
      %s17 = smul.addr %s14, 8
      %s18 = scalar_lea.hbm %s0, %s17
      %s20 = sshll.u32 %s18, 4
      %s21 = int_to_ptr.hbm [resolvable:$true] %s20
      %s22 = sshll.u32 [#allocation3], 4
      %s23 = int_to_ptr.vmem [resolvable:$true] %s22
      %25 = dma.hbm_to_vmem [thread:$0]  %s21, 128, %s23, [#allocation4]
    $region5: #{tpu_custom_call.1} parent=1 // pred_fallthru
      _
    // Predicated region
    $region6: #{tpu_custom_call.1} parent=1 // pred_check
      _
    $region7: #{tpu_custom_call.1} parent=1 // pred_check_branch
      %27 = sbr.rel (0) target = $region9
    $region8: #{tpu_custom_call.1} parent=1 // pred_region
      %s28 = sadd.s32 0, 0
      %p29 = scmp.lt.s32.totalorder %s28, 0
      %s30 = scalar_select %p29, %s28, 0
      %32 = vsyncadd [#allocation7], 0
      %s33 = smul.addr %s30, 8
      %s34 = scalar_lea.hbm %s1, %s33
      %s36 = sshll.u32 %s34, 4
      %s37 = int_to_ptr.hbm [resolvable:$true] %s36
      %s38 = sshll.u32 [#allocation6], 4
      %s39 = int_to_ptr.vmem [resolvable:$true] %s38
      %41 = dma.hbm_to_vmem [thread:$0]  %s37, 128, %s39, [#allocation7]
    $region9: #{tpu_custom_call.1} parent=1 // pred_fallthru
      _
    // Predicated region
    $region10: #{tpu_custom_call.1} parent=1 // pred_check
      _
    $region11: #{tpu_custom_call.1} parent=1 // pred_check_branch
      %43 = sbr.rel (0) target = $region13
    $region12: #{tpu_custom_call.1} parent=1 // pred_region
      %45 = dma.done [#allocation4], 128
    $region13: #{tpu_custom_call.1} parent=1 // pred_fallthru
      _
    // Predicated region
    $region14: #{tpu_custom_call.1} parent=1 // pred_check
      _
    $region15: #{tpu_custom_call.1} parent=1 // pred_check_branch
      %47 = sbr.rel (0) target = $region17
    $region16: #{tpu_custom_call.1} parent=1 // pred_region
      %49 = dma.done [#allocation7], 128
    $region17: #{tpu_custom_call.1} parent=1 // pred_fallthru
      _
    %s50 = sadd.s32 0, 0
    %p51 = scmp.lt.s32.totalorder %s50, 0
    %s52 = scalar_select %p51, %s50, 0
    %s53 = sadd.s32 0, 0
    %p54 = scmp.lt.s32.totalorder %s53, 0
    %s55 = scalar_select %p54, %s53, 0
    %p56 = scmp.eq.s32.totalorder 0, 0
    // Predicated region
    $region18: #{tpu_custom_call.1} parent=1 // pred_check
      %p57 = pneg %p56
    $region19: #{tpu_custom_call.1} parent=1 // pred_check_branch
      %59 = sbr.rel (%p57) target = $region21
    $region20: #{tpu_custom_call.1} parent=1 // pred_region
      %60 = vst [vmem:[#allocation2] sm:$0xff] 0.0
    $region21: #{tpu_custom_call.1} parent=1 // pred_fallthru
      _
    %v61 = vld [vmem:[#allocation3] sm:$0xff]
    %v62 = vld [vmem:[#allocation6] sm:$0xff]
    %v63 = vmul.f32 %v61, %v62
    %64 = vrot.lane.b32.xlu0 %v63, 1
    %v65 = vpop.permute.xlu0 %64
    %v66 = vadd.f32 %v63, %v65
    %67 = vrot.lane.b32.xlu0 %v66, 2
    %v68 = vpop.permute.xlu0 %67
    %v69 = vadd.f32 %v66, %v68
    %v70 = vlaneseq
    %v71 = vand.u32 %v70, 127
    %v72 = vand.u32 %v71, 3
    %vm73 = vcmp.eq.s32.totalorder %v72, 3
    %v74 = vsel %vm73, 1, 0
    %v75 = vcvt.s32.f32 %v74
    %v76 = vmul.f32 %v69, %v69
    %v77 = vmul.f32 %v76, %v75
    %v78 = vld [vmem:[#allocation2] sm:$0xff]
    %v79 = vadd.f32 %v77, 0.0
    %v80 = vadd.f32 %v78, %v79
    %81 = vst [vmem:[#allocation2] sm:$0xff] %v80
    // Predicated region
    $region22: #{tpu_custom_call.1} parent=1 // pred_check
      %p82 = pneg %p56
    $region23: #{tpu_custom_call.1} parent=1 // pred_check_branch
      %84 = sbr.rel (%p82) target = $region25
    $region24: #{tpu_custom_call.1} parent=1 // pred_region
      %v85 = vld [vmem:[#allocation2] sm:$0xff]
      %86 = vst [vmem:[#allocation8] sm:$0xff] %v85
    $region25: #{tpu_custom_call.1} parent=1 // pred_fallthru
      _
    // Predicated region
    $region26: #{tpu_custom_call.1} parent=1 // pred_check
      _
    $region27: #{tpu_custom_call.1} parent=1 // pred_check_branch
      %88 = sbr.rel (0) target = $region29
    $region28: #{tpu_custom_call.1} parent=1 // pred_region
      %90 = vsyncadd [#allocation5], 0
      %s92 = sshll.u32 [#allocation8], 4
      %s93 = int_to_ptr.vmem [resolvable:$true] %s92
      %s94 = sshll.u32 %s2, 4
      %s95 = int_to_ptr.hbm [resolvable:$true] %s94
      %97 = dma.vmem_to_hbm [thread:$0]  %s93, 128, %s95, [#allocation5]
    $region29: #{tpu_custom_call.1} parent=1 // pred_fallthru
      _
    // Predicated region
    $region30: #{tpu_custom_call.1} parent=1 // pred_check
      _
    $region31: #{tpu_custom_call.1} parent=1 // pred_check_branch
      %99 = sbr.rel (0) target = $region33
    $region32: #{tpu_custom_call.1} parent=1 // pred_region
      %101 = dma.done [#allocation5], 128
    $region33: #{tpu_custom_call.1} parent=1 // pred_fallthru
      _
    %102 = vsyncpa [#allocation4], 1
    %103 = vsyncpa [#allocation7], 1
    %104 = vsyncpa [#allocation5], 1

</llo_original>
